<compile_context>
chip_gen: v7x
topology: tpu7x:2x2x1
jax: 0.10.0
libtpu: 0.0.40
codegen_flags: <defaults>
</compile_context>

<pallas_src>
import functools

import jax
import jax.numpy as jnp
from jax import lax
from jax.experimental import pallas as pl
from jax.experimental.pallas import tpu as pltpu


# --------------------------------------------------------------------------------------
# Pallas kernel: fused 3x3 "same" conv + bias + ReLU on a block of B samples.
# --------------------------------------------------------------------------------------
def _conv_relu_kernel(x_ref, r_ref, o_ref):
    # x_ref: (B, Hp, Kpad)   bf16  zero-padded rows, (ci, wp)-ordered lanes + ones col (bias)
    # r_ref: (KH*Kpad, Qout) bf16  block-Toeplitz conv weights (bias folded into kh=0 slab)
    # o_ref: (B, H, Qout)    f32   lane-dense output slab (Qout = W*Cout = 128)
    B, Hp, Kpad = x_ref.shape
    _, H, Qout = o_ref.shape
    KH = Hp - H + 1

    x = x_ref[...]                                                  # (B, Hp, Kpad) bf16
    # Fused "im2col": concatenate the KH shifted row windows along lanes and do a single
    # MXU matmul with K = KH*Kpad (one push/pop sequence instead of KH of them).
    xcat = jnp.concatenate([x[:, kh:kh + H, :] for kh in range(KH)], axis=-1)
    acc = jnp.dot(xcat.reshape(B * H, KH * Kpad), r_ref[...],
                  preferred_element_type=jnp.float32)               # f32 accumulation
    o_ref[...] = jnp.maximum(acc, 0.0).reshape(B, H, Qout).astype(o_ref.dtype)


# --------------------------------------------------------------------------------------
# One-time weight preprocessing (hoisted out of the forward path).
# --------------------------------------------------------------------------------------
def build_block_toeplitz_weights(w_khkwcico, b, out_w):
    """R[kh, ci*Wp + wp, w*Cout + co] = W[kh, wp-w, ci, co] for 0 <= wp-w < KW, else 0.

    Bias is folded into R[0]'s extra "ones" row so it is added exactly once per output row.
    Returned in bf16 (MXU-native operand dtype); accumulation stays f32 in the kernel.
    """
    KH, KW, Cin, Cout = w_khkwcico.shape
    W = int(out_w)
    Wp = W + KW - 1
    Qout = W * Cout
    Kpad = ((Cin * Wp + 1 + 127) // 128) * 128                      # +1 for the bias column

    sel = (jnp.arange(Wp)[None, None, :]
           == (jnp.arange(W)[None, :, None] + jnp.arange(KW)[:, None, None])
           ).astype(jnp.float32)                                    # (KW, W, Wp)
    r_core = jnp.einsum('kwp,hkio->hipwo', sel,
                        w_khkwcico.astype(jnp.float32))             # (KH, Cin, Wp, W, Cout)
    r = jnp.zeros((KH, Kpad, Qout), jnp.float32)
    r = r.at[:, :Cin * Wp, :].set(r_core.reshape(KH, Cin * Wp, Qout))
    r = r.at[0, Cin * Wp, :].set(jnp.tile(b.astype(jnp.float32), W))  # bias row (added once)
    return r.astype(jnp.bfloat16)


# --------------------------------------------------------------------------------------
# Per-call wrapper (jitted). Only cheap, fusible layout plumbing outside the kernel.
# --------------------------------------------------------------------------------------
@functools.partial(jax.jit, static_argnums=(2,))
def conv3x3_relu_pallas(x_nchw, r, kw):
    N, Cin, H, W = x_nchw.shape
    KH, Kpad, Qout = r.shape
    KW = kw
    Hp, Wp = H + KH - 1, W + KW - 1
    ph, pw = (KH - 1) // 2, (KW - 1) // 2

    # Input slab built in ONE fused XLA pass: R's rows are (ci, wp)-ordered, so the padded
    # NCHW tensor only needs pad + axis-swap + reshape + concat (no zeros+scatter slab).
    x16 = x_nchw.astype(jnp.bfloat16)
    xp = jnp.pad(x16, ((0, 0), (0, 0), (ph, KH - 1 - ph), (pw, KW - 1 - pw)))
    core = jnp.transpose(xp, (0, 2, 1, 3)).reshape(N, Hp, Cin * Wp)
    slab = jnp.concatenate(
        [core,
         jnp.ones((N, Hp, 1), jnp.bfloat16),                        # ones column -> bias term
         jnp.zeros((N, Hp, Kpad - Cin * Wp - 1), jnp.bfloat16)],    # lane pad to 128
        axis=-1)                                                    # (N, Hp, Kpad)

    # Samples per grid step: amortize the ~0.35 us/step overhead and fill the MXU's rows.
    if N <= 4:
        B = N                       # tiny batch: one step on one TC beats splitting 1 vmatmul
    else:
        B = min(64, -(-N // 2))     # >= 2 steps so both v7x TCs get work; B=64 keeps the
                                    # double-buffered slabs ~2 MiB (<< 32 MiB scoped VMEM)
    grid = (pl.cdiv(N, B),)         # partial last block: padded reads, OOB writes discarded

    out = pl.pallas_call(
        _conv_relu_kernel,
        out_shape=jax.ShapeDtypeStruct((N, H, Qout), jnp.float32),
        grid_spec=pltpu.PrefetchScalarGridSpec(
            num_scalar_prefetch=0,
            grid=grid,
            in_specs=[
                pl.BlockSpec((B, Hp, Kpad), lambda n: (n, 0, 0)),
                # Weights: constant index_map -> resident across the whole grid.
                # (pl.Buffered(1) would drop the redundant 2nd buffer; omitted for
                #  portability — it is only ~96 KiB either way.)
                pl.BlockSpec((KH * Kpad, Qout), lambda n: (0, 0)),
            ],
            out_specs=pl.BlockSpec((B, H, Qout), lambda n: (n, 0, 0)),
        ),
        compiler_params=pltpu.CompilerParams(
            dimension_semantics=("parallel",),
            vmem_limit_bytes=32 * 1024 * 1024,
        ),
    )(slab, r.reshape(KH * Kpad, Qout))

    # Lane-dense (w, co) output -> NCHW outside the kernel (keeps kernel stores unmasked).
    out = out.reshape(N, H, W, Qout // W)
    return jnp.transpose(out, (0, 3, 1, 2))


# --------------------------------------------------------------------------------------
# ShardedDataParallel forward-pass analogue.
# --------------------------------------------------------------------------------------
class ShardedDataParallelPallas:
    """JAX/Pallas analogue of fairscale ShardedDataParallel (forward pass only)."""

    def __init__(self, params, world_size=1, broadcast_buffers=True):
        self.params = params
        self.world_size = world_size
        self.enable_broadcast_buffers = broadcast_buffers
        self.should_accumulate_grads = False
        self._grad_to_be_reduced = [True for _ in jax.tree_util.tree_leaves(params)]
        w, _ = params
        self._kh, self._kw = int(w.shape[0]), int(w.shape[1])
        # Hoisted out of the per-call path: block-Toeplitz weights depend only on the conv
        # weights and the output width, so build once and cache.
        self._r_cache = {}

    def _get_toeplitz(self, out_w):
        r = self._r_cache.get(out_w)
        if r is None:
            w, b = self.params
            r = build_block_toeplitz_weights(w, b, out_w)
            self._r_cache[out_w] = r
        return r

    def sync_buffers(self, blocking=True):
        # world_size == 1: dist.broadcast of module buffers is the identity.
        # TODO(synk): multi-rank buffer broadcast would use pltpu.make_async_remote_copy +
        # pltpu.get_barrier_semaphore; the backward-hook bucketed dist.reduce of gradients
        # has no forward-pass compute at all.
        pass

    def forward(self, x):
        if self.enable_broadcast_buffers:
            self.sync_buffers(blocking=True)
        # Prime (reset) the backward-pass bookkeeping, exactly as the PyTorch forward does.
        self._grad_to_be_reduced = [True] * len(self._grad_to_be_reduced)
        r = self._get_toeplitz(x.shape[-1])
        return conv3x3_relu_pallas(x, r, self._kw)

    __call__ = forward


if __name__ == "__main__":
    key = jax.random.PRNGKey(0)
    kx, kwk, kb = jax.random.split(key, 3)

    N, Cin, H, W = 2, 4, 16, 16
    Cout, KH, KW = 8, 3, 3

    x = jax.random.normal(kx, (N, Cin, H, W), dtype=jnp.float32)
    fan_in = Cin * KH * KW
    w = jax.random.normal(kwk, (KH, KW, Cin, Cout), dtype=jnp.float32) / jnp.sqrt(fan_in)
    b = jax.random.normal(kb, (Cout,), dtype=jnp.float32) * 0.01

    model = ShardedDataParallelPallas((w, b), world_size=1)
    y = jax.block_until_ready(model(x))

    assert y.shape == (N, Cout, H, W), y.shape
    assert bool(jnp.all(jnp.isfinite(y)))

    # Reference: Conv2d(pad=1)+bias+ReLU on the same bf16-rounded operands the MXU sees;
    # both sides accumulate in f32, so this comparison is tight.
    x16 = x.astype(jnp.bfloat16).astype(jnp.float32)
    w16 = w.astype(jnp.bfloat16).astype(jnp.float32)
    b16 = b.astype(jnp.bfloat16).astype(jnp.float32)
    ref = lax.conv_general_dilated(
        x16, w16, window_strides=(1, 1), padding=((1, 1), (1, 1)),
        dimension_numbers=("NCHW", "HWIO", "NCHW"),
        precision=lax.Precision.HIGHEST)
    ref = jnp.maximum(ref + b16[None, :, None, None], 0.0)
    assert bool(jnp.allclose(y, ref, atol=2e-3, rtol=2e-3)), float(jnp.max(jnp.abs(y - ref)))

    print("KERNEL_OK")
</pallas_src>

<mosaic_0001>
module attributes {stable_mosaic.version = 11 : i64} {
  func.func @_conv_relu_kernel(%arg0: i32, %arg1: memref<2x18x128xbf16, #tpu.memory_space<vmem>>, %arg2: memref<384x128xbf16, #tpu.memory_space<vmem>>, %arg3: memref<2x16x128xf32, #tpu.memory_space<vmem>>) attributes {dimension_semantics = [#tpu.dimension_semantics<parallel>], iteration_bounds = array<i64: 1>, scalar_prefetch = 0 : i64, scratch_operands = 0 : i64, tpu.core_type = #tpu.core_type<tc>, window_params = [{transform_indices = @transform_0, window_bounds = array<i64: 2, 18, 128>}, {pipeline_mode = #tpu.pipeline_mode<synchronous>, transform_indices = @transform_1, window_bounds = array<i64: 384, 128>}, {transform_indices = @transform_2, window_bounds = array<i64: 2, 16, 128>}]} {
    %c0 = arith.constant 0 : index
    %c0_0 = arith.constant 0 : index
    %c0_1 = arith.constant 0 : index
    %0 = vector.load %arg1[%c0, %c0_0, %c0_1] : memref<2x18x128xbf16, #tpu.memory_space<vmem>>, vector<2x18x128xbf16>
    %1 = vector.extract_strided_slice %0 {offsets = [0, 0, 0], sizes = [2, 16, 128], strides = [1, 1, 1]} : vector<2x18x128xbf16> to vector<2x16x128xbf16>
    %2 = vector.extract_strided_slice %0 {offsets = [0, 1, 0], sizes = [2, 16, 128], strides = [1, 1, 1]} : vector<2x18x128xbf16> to vector<2x16x128xbf16>
    %3 = vector.extract_strided_slice %0 {offsets = [0, 2, 0], sizes = [2, 16, 128], strides = [1, 1, 1]} : vector<2x18x128xbf16> to vector<2x16x128xbf16>
    %4 = tpu.concatenate %1, %2, %3 in 2 : vector<2x16x128xbf16>, vector<2x16x128xbf16>, vector<2x16x128xbf16> -> vector<2x16x384xbf16>
    %5 = vector.shape_cast %4 : vector<2x16x384xbf16> to vector<32x384xbf16>
    %c0_2 = arith.constant 0 : index
    %c0_3 = arith.constant 0 : index
    %6 = vector.load %arg2[%c0_2, %c0_3] : memref<384x128xbf16, #tpu.memory_space<vmem>>, vector<384x128xbf16>
    %cst = arith.constant dense<0.000000e+00> : vector<32x128xf32>
    %7 = tpu.matmul %5, %6, %cst {dimension_numbers = #tpu.dot_dimension_numbers<[1], [0], [0], [1], [0, 0, 1, 1], [], []>} : vector<32x384xbf16>, vector<384x128xbf16>, vector<32x128xf32> -> vector<32x128xf32>
    %cst_4 = arith.constant 0.000000e+00 : f32
    %8 = vector.broadcast %cst_4 : f32 to vector<32x128xf32>
    %9 = arith.maximumf %7, %8 : vector<32x128xf32>
    %10 = vector.shape_cast %9 : vector<32x128xf32> to vector<2x16x128xf32>
    %c0_5 = arith.constant 0 : index
    %c0_6 = arith.constant 0 : index
    %c0_7 = arith.constant 0 : index
    %11 = vector.load %arg3[%c0_5, %c0_6, %c0_7] : memref<2x16x128xf32, #tpu.memory_space<vmem>>, vector<2x16x128xf32>
    tpu.vector_store %arg3[%c0_5, %c0_6, %c0_7], %10 {strides = array<i32>} : memref<2x16x128xf32, #tpu.memory_space<vmem>>, vector<2x16x128xf32>,
    return
  }
  func.func @transform_0(%arg0: i32) -> (i32, i32, i32) {
    %c0_i32 = arith.constant 0 : i32
    %c0_i32_0 = arith.constant 0 : i32
    %c0_i32_1 = arith.constant 0 : i32
    return %arg0, %c0_i32, %c0_i32_0 : i32, i32, i32
  }
  func.func @transform_1(%arg0: i32) -> (i32, i32) {
    %c0_i32 = arith.constant 0 : i32
    %c0_i32_0 = arith.constant 0 : i32
    %c0_i32_1 = arith.constant 0 : i32
    return %c0_i32, %c0_i32_0 : i32, i32
  }
  func.func @transform_2(%arg0: i32) -> (i32, i32, i32) {
    %c0_i32 = arith.constant 0 : i32
    %c0_i32_0 = arith.constant 0 : i32
    %c0_i32_1 = arith.constant 0 : i32
    return %arg0, %c0_i32, %c0_i32_0 : i32, i32, i32
  }
}

</mosaic_0001>

<llo_original>
// kernel: conv3x3_relu_pallas.1
$region0: #{conv3x3_relu_pallas.1}
  #allocation0 [shape = 'u32[]', space=smem, size = 0x4, offset = 0x4, fixed_abs, tag = 'smem constant byte address 0x4 - core index']
  #allocation1 [shape = 'u32[144,128]{1,0:T(1,128)}', space=vmem, size = 0x12000, scoped, tag = 'internal scratch']
  %s0 = inlined_call_operand.vmem [shape: bf16[2,18,128], index: 0, kind: input, shape index: {}]
  %s1 = inlined_call_operand.vmem [shape: bf16[384,128], index: 1, kind: input, shape index: {}]
  %s2 = inlined_call_operand.vmem [shape: f32[2,16,128], index: 2, kind: output, shape index: {}]
  %s3 = sld [smem:[#allocation0]]
  $region18: #{conv3x3_relu_pallas.1} parent=0
    _
  %s5 = ssub.s32 1, %s3
  %s6 = scalar_select 0, %s5, %s3
  // Predicated region
  $region2: #{conv3x3_relu_pallas.1} parent=0 // pred_check
    _
  $region3: #{conv3x3_relu_pallas.1} parent=0 // pred_check_branch
    %8 = sbr.rel (0) target = $region5
  $region4: #{conv3x3_relu_pallas.1} parent=0 // pred_region
    _
  $region5: #{conv3x3_relu_pallas.1} parent=0 // pred_fallthru
    _
  // Predicated region
  $region6: #{conv3x3_relu_pallas.1} parent=0 // pred_check
    _
  $region7: #{conv3x3_relu_pallas.1} parent=0 // pred_check_branch
    %10 = sbr.rel (0) target = $region9
  $region8: #{conv3x3_relu_pallas.1} parent=0 // pred_region
    _
  $region9: #{conv3x3_relu_pallas.1} parent=0 // pred_fallthru
    _
  %v12 = vld [vmem:[%s0] sm:$0xf]
  %v13 = vld [vmem:[%s0 + $0x4] sm:$0xf]
  %v14 = vld [vmem:[%s0 + $0x8] sm:$0x1]
  %v15 = vld [vmem:[%s0 + $0xc] sm:$0xf]
  %v16 = vld [vmem:[%s0 + $0x10] sm:$0xf]
  %v17 = vld [vmem:[%s0 + $0x14] sm:$0x1]
  %v22 = vunpack.c.l.b16 %v12
  %v23 = vunpack.c.l.b16 %v13
  %v24 = vunpack.c.l.b16 %v15
  %v25 = vunpack.c.l.b16 %v16
  %v26 = vpack.c.b16 %v23, %v22
  %v27 = vpack.c.b16 %v25, %v24
  %v32 = vunpack.c.l.b16 %v14
  %v33 = vunpack.c.l.b16 %v17
  %v34 = vpack.c.b16 %v32, %v32
  %v35 = vpack.c.b16 %v33, %v33
  %vm36 = vsmask.f32 7424
  %v38 = vshrl.u32 %v26, 16
  %v40 = vshll.u32 %v26, 16
  %v42 = vrot.slane %v40, 1
  %v43 = vor.u32 %v38, %v42
  %v45 = vshll.u32 %v34, 16
  %v47 = vrot.slane %v45, 1
  %v48 = vsel %vm36, %v43, %v47
  %v50 = vshrl.u32 %v27, 16
  %v52 = vshll.u32 %v27, 16
  %v54 = vrot.slane %v52, 1
  %v55 = vor.u32 %v50, %v54
  %v57 = vshll.u32 %v35, 16
  %v59 = vrot.slane %v57, 1
  %v60 = vsel %vm36, %v55, %v59
  %vm63 = vcmask 1046528
  %v64 = vrot.slane %v26, 1
  %v65 = vrot.slane %v34, 1
  %v66 = vsel %vm63, %v64, %v65
  %v67 = vrot.slane %v27, 1
  %v68 = vrot.slane %v35, 1
  %v69 = vsel %vm63, %v67, %v68
  %v72 = vld [vmem:[%s1] sm:$0xf]
  %v73 = vld [vmem:[%s1 + $0x4] sm:$0xf]
  %v74 = vld [vmem:[%s1 + $0x8] sm:$0xf]
  %v75 = vld [vmem:[%s1 + $0xc] sm:$0xf]
  %v76 = vld [vmem:[%s1 + $0x10] sm:$0xf]
  %v77 = vld [vmem:[%s1 + $0x14] sm:$0xf]
  %v78 = vld [vmem:[%s1 + $0x18] sm:$0xf]
  %v79 = vld [vmem:[%s1 + $0x1c] sm:$0xf]
  %v80 = vld [vmem:[%s1 + $0x20] sm:$0xf]
  %v81 = vld [vmem:[%s1 + $0x24] sm:$0xf]
  %v82 = vld [vmem:[%s1 + $0x28] sm:$0xf]
  %v83 = vld [vmem:[%s1 + $0x2c] sm:$0xf]
  %v84 = vld [vmem:[%s1 + $0x30] sm:$0xf]
  %v85 = vld [vmem:[%s1 + $0x34] sm:$0xf]
  %v86 = vld [vmem:[%s1 + $0x38] sm:$0xf]
  %v87 = vld [vmem:[%s1 + $0x3c] sm:$0xf]
  %v88 = vld [vmem:[%s1 + $0x40] sm:$0xf]
  %v89 = vld [vmem:[%s1 + $0x44] sm:$0xf]
  %v90 = vld [vmem:[%s1 + $0x48] sm:$0xf]
  %v91 = vld [vmem:[%s1 + $0x4c] sm:$0xf]
  %v92 = vld [vmem:[%s1 + $0x50] sm:$0xf]
  %v93 = vld [vmem:[%s1 + $0x54] sm:$0xf]
  %v94 = vld [vmem:[%s1 + $0x58] sm:$0xf]
  %v95 = vld [vmem:[%s1 + $0x5c] sm:$0xf]
  %v96 = vld [vmem:[%s1 + $0x60] sm:$0xf]
  %v97 = vld [vmem:[%s1 + $0x64] sm:$0xf]
  %v98 = vld [vmem:[%s1 + $0x68] sm:$0xf]
  %v99 = vld [vmem:[%s1 + $0x6c] sm:$0xf]
  %v100 = vld [vmem:[%s1 + $0x70] sm:$0xf]
  %v101 = vld [vmem:[%s1 + $0x74] sm:$0xf]
  %v102 = vld [vmem:[%s1 + $0x78] sm:$0xf]
  %v103 = vld [vmem:[%s1 + $0x7c] sm:$0xf]
  %v104 = vld [vmem:[%s1 + $0x80] sm:$0xf]
  %v105 = vld [vmem:[%s1 + $0x84] sm:$0xf]
  %v106 = vld [vmem:[%s1 + $0x88] sm:$0xf]
  %v107 = vld [vmem:[%s1 + $0x8c] sm:$0xf]
  %v108 = vld [vmem:[%s1 + $0x90] sm:$0xf]
  %v109 = vld [vmem:[%s1 + $0x94] sm:$0xf]
  %v110 = vld [vmem:[%s1 + $0x98] sm:$0xf]
  %v111 = vld [vmem:[%s1 + $0x9c] sm:$0xf]
  %v112 = vld [vmem:[%s1 + $0xa0] sm:$0xf]
  %v113 = vld [vmem:[%s1 + $0xa4] sm:$0xf]
  %v114 = vld [vmem:[%s1 + $0xa8] sm:$0xf]
  %v115 = vld [vmem:[%s1 + $0xac] sm:$0xf]
  %v116 = vld [vmem:[%s1 + $0xb0] sm:$0xf]
  %v117 = vld [vmem:[%s1 + $0xb4] sm:$0xf]
  %v118 = vld [vmem:[%s1 + $0xb8] sm:$0xf]
  %v119 = vld [vmem:[%s1 + $0xbc] sm:$0xf]
  %v168 = vunpack.c.l.b16 %v72
  %v169 = vunpack.c.l.b16 %v73
  %v170 = vunpack.c.l.b16 %v74
  %v171 = vunpack.c.l.b16 %v75
  %v172 = vunpack.c.l.b16 %v76
  %v173 = vunpack.c.l.b16 %v77
  %v174 = vunpack.c.l.b16 %v78
  %v175 = vunpack.c.l.b16 %v79
  %v176 = vunpack.c.l.b16 %v80
  %v177 = vunpack.c.l.b16 %v81
  %v178 = vunpack.c.l.b16 %v82
  %v179 = vunpack.c.l.b16 %v83
  %v180 = vunpack.c.l.b16 %v84
  %v181 = vunpack.c.l.b16 %v85
  %v182 = vunpack.c.l.b16 %v86
  %v183 = vunpack.c.l.b16 %v87
  %v184 = vunpack.c.l.b16 %v88
  %v185 = vunpack.c.l.b16 %v89
  %v186 = vunpack.c.l.b16 %v90
  %v187 = vunpack.c.l.b16 %v91
  %v188 = vunpack.c.l.b16 %v92
  %v189 = vunpack.c.l.b16 %v93
  %v190 = vunpack.c.l.b16 %v94
  %v191 = vunpack.c.l.b16 %v95
  %v192 = vunpack.c.l.b16 %v96
  %v193 = vunpack.c.l.b16 %v97
  %v194 = vunpack.c.l.b16 %v98
  %v195 = vunpack.c.l.b16 %v99
  %v196 = vunpack.c.l.b16 %v100
  %v197 = vunpack.c.l.b16 %v101
  %v198 = vunpack.c.l.b16 %v102
  %v199 = vunpack.c.l.b16 %v103
  %v200 = vunpack.c.l.b16 %v104
  %v201 = vunpack.c.l.b16 %v105
  %v202 = vunpack.c.l.b16 %v106
  %v203 = vunpack.c.l.b16 %v107
  %v204 = vunpack.c.l.b16 %v108
  %v205 = vunpack.c.l.b16 %v109
  %v206 = vunpack.c.l.b16 %v110
  %v207 = vunpack.c.l.b16 %v111
  %v208 = vunpack.c.l.b16 %v112
  %v209 = vunpack.c.l.b16 %v113
  %v210 = vunpack.c.l.b16 %v114
  %v211 = vunpack.c.l.b16 %v115
  %v212 = vunpack.c.l.b16 %v116
  %v213 = vunpack.c.l.b16 %v117
  %v214 = vunpack.c.l.b16 %v118
  %v215 = vunpack.c.l.b16 %v119
  %v216 = vpack.c.b16 %v169, %v168
  %v217 = vpack.c.b16 %v171, %v170
  %v218 = vpack.c.b16 %v173, %v172
  %v219 = vpack.c.b16 %v175, %v174
  %v220 = vpack.c.b16 %v177, %v176
  %v221 = vpack.c.b16 %v179, %v178
  %v222 = vpack.c.b16 %v181, %v180
  %v223 = vpack.c.b16 %v183, %v182
  %v224 = vpack.c.b16 %v185, %v184
  %v225 = vpack.c.b16 %v187, %v186
  %v226 = vpack.c.b16 %v189, %v188
  %v227 = vpack.c.b16 %v191, %v190
  %v228 = vpack.c.b16 %v193, %v192
  %v229 = vpack.c.b16 %v195, %v194
  %v230 = vpack.c.b16 %v197, %v196
  %v231 = vpack.c.b16 %v199, %v198
  %v232 = vpack.c.b16 %v201, %v200
  %v233 = vpack.c.b16 %v203, %v202
  %v234 = vpack.c.b16 %v205, %v204
  %v235 = vpack.c.b16 %v207, %v206
  %v236 = vpack.c.b16 %v209, %v208
  %v237 = vpack.c.b16 %v211, %v210
  %v238 = vpack.c.b16 %v213, %v212
  %v239 = vpack.c.b16 %v215, %v214
  %264 = vmatprep.subr.bf16.mxu0 0
  %265 = vmatpush1.bf16.msra.mxu0 %v216
  %266 = vmatprep.subr.bf16.mxu0 0
  %267 = vmatpush1.bf16.msra.mxu0 %v217
  %268 = vmatprep.subr.bf16.mxu0 0
  %269 = vmatpush1.bf16.msra.mxu0 %v218
  %270 = vmatprep.subr.bf16.mxu0 0
  %271 = vmatpush1.bf16.msra.mxu0 %v219
  %272 = vmatprep.subr.bf16.mxu0 0
  %273 = vmatpush1.bf16.msra.mxu0 %v220
  %274 = vmatprep.subr.bf16.mxu0 0
  %275 = vmatpush1.bf16.msra.mxu0 %v221
  %276 = vmatprep.subr.bf16.mxu0 0
  %277 = vmatpush1.bf16.msra.mxu0 %v222
  %278 = vmatprep.subr.bf16.mxu0 0
  %279 = vmatpush1.bf16.msra.mxu0 %v223
  %280 = vmatprep.subr.bf16.mxu0 0
  %281 = vmatpush1.bf16.msra.mxu0 %v224
  %282 = vmatprep.subr.bf16.mxu0 0
  %283 = vmatpush1.bf16.msra.mxu0 %v225
  %284 = vmatprep.subr.bf16.mxu0 0
  %285 = vmatpush1.bf16.msra.mxu0 %v226
  %286 = vmatprep.subr.bf16.mxu0 0
  %287 = vmatpush1.bf16.msra.mxu0 %v227
  %288 = vmatprep.subr.bf16.mxu0 0
  %289 = vmatpush1.bf16.msra.mxu0 %v228
  %290 = vmatprep.subr.bf16.mxu0 0
  %291 = vmatpush1.bf16.msra.mxu0 %v229
  %292 = vmatprep.subr.bf16.mxu0 0
  %293 = vmatpush1.bf16.msra.mxu0 %v230
  %294 = vmatprep.subr.bf16.mxu0 0
  %295 = vmatpush1.bf16.msra.mxu0 %v231
  %296 = vmatprep.mubr.bf16.mxu0 %v48
  %297 = vmatmul.mubr.bf16.gmra.mrb[0].mxu0 %v26
  %v298 = vpop.f32.mrb[0].mxu0
  %v299 = vadd.f32 0.0, %v298
  %v300 = vpop.f32.mrb[0].mxu0
  %v301 = vpop.f32.mrb[0].mxu0
  %v302 = vadd.f32 0.0, %v301
  %v303 = vpop.f32.mrb[0].mxu0
  %304 = vmatprep.mubr.bf16.mxu0 %v60
  %305 = vmatmul.mubr.bf16.gmra.mrb[0].mxu0 %v27
  %v306 = vpop.f32.mrb[0].mxu0
  %v307 = vadd.f32 0.0, %v306
  %v308 = vpop.f32.mrb[0].mxu0
  %v309 = vpop.f32.mrb[0].mxu0
  %v310 = vadd.f32 0.0, %v309
  %v311 = vpop.f32.mrb[0].mxu0
  %312 = vdwg.mxu0
  %313 = vmatprep.subr.bf16.mxu0 0
  %314 = vmatpush1.bf16.msra.mxu0 %v232
  %315 = vmatprep.subr.bf16.mxu0 0
  %316 = vmatpush1.bf16.msra.mxu0 %v233
  %317 = vmatprep.subr.bf16.mxu0 0
  %318 = vmatpush1.bf16.msra.mxu0 %v234
  %319 = vmatprep.subr.bf16.mxu0 0
  %320 = vmatpush1.bf16.msra.mxu0 %v235
  %321 = vmatprep.subr.bf16.mxu0 0
  %322 = vmatpush1.bf16.msra.mxu0 %v236
  %323 = vmatprep.subr.bf16.mxu0 0
  %324 = vmatpush1.bf16.msra.mxu0 %v237
  %325 = vmatprep.subr.bf16.mxu0 0
  %326 = vmatpush1.bf16.msra.mxu0 %v238
  %327 = vmatprep.subr.bf16.mxu0 0
  %328 = vmatpush1.bf16.msra.mxu0 %v239
  %329 = vmatprep.subr.bf16.mxu0 0
  %330 = vmatpush1.bf16.msra.mxu0 0
  %331 = vmatprep.subr.bf16.mxu0 0
  %332 = vmatpush1.bf16.msra.mxu0 0
  %333 = vmatprep.subr.bf16.mxu0 0
  %334 = vmatpush1.bf16.msra.mxu0 0
  %335 = vmatprep.subr.bf16.mxu0 0
  %336 = vmatpush1.bf16.msra.mxu0 0
  %337 = vmatprep.subr.bf16.mxu0 0
  %338 = vmatpush1.bf16.msra.mxu0 0
  %339 = vmatprep.subr.bf16.mxu0 0
  %340 = vmatpush1.bf16.msra.mxu0 0
  %341 = vmatprep.subr.bf16.mxu0 0
  %342 = vmatpush1.bf16.msra.mxu0 0
  %343 = vmatprep.subr.bf16.mxu0 0
  %344 = vmatpush1.bf16.msra.mxu0 0
  %345 = vmatprep.mubr.bf16.mxu0 0
  %346 = vmatmul.mubr.bf16.gmra.mrb[0].mxu0 %v66
  %v347 = vpop.f32.mrb[0].mxu0
  %v348 = vadd.f32 %v299, %v347
  %v349 = vpop.f32.mrb[0].mxu0
  %v350 = vpop.f32.mrb[0].mxu0
  %v351 = vadd.f32 %v302, %v350
  %v352 = vpop.f32.mrb[0].mxu0
  %353 = vmatprep.mubr.bf16.mxu0 0
  %354 = vmatmul.mubr.bf16.gmra.mrb[0].mxu0 %v69
  %v355 = vpop.f32.mrb[0].mxu0
  %v356 = vadd.f32 %v307, %v355
  %v357 = vpop.f32.mrb[0].mxu0
  %v358 = vpop.f32.mrb[0].mxu0
  %v359 = vadd.f32 %v310, %v358
  %v360 = vpop.f32.mrb[0].mxu0
  %361 = vdwg.mxu0
  %v362 = vmax.f32 %v348, 0.0
  %v363 = vmax.f32 %v351, 0.0
  %v364 = vmax.f32 %v356, 0.0
  %v365 = vmax.f32 %v359, 0.0
  %366 = vst [vmem:[%s2] sm:$0xff] %v362
  %367 = vst [vmem:[%s2 + $0x8] sm:$0xff] %v363
  %368 = vst [vmem:[%s2 + $0x10] sm:$0xff] %v364
  %369 = vst [vmem:[%s2 + $0x18] sm:$0xff] %v365
  // Predicated region
  $region10: #{conv3x3_relu_pallas.1} parent=0 // pred_check
    _
  $region11: #{conv3x3_relu_pallas.1} parent=0 // pred_check_branch
    %371 = sbr.rel (0) target = $region13
  $region12: #{conv3x3_relu_pallas.1} parent=0 // pred_region
    _
  $region13: #{conv3x3_relu_pallas.1} parent=0 // pred_fallthru
    _
  // Predicated region
  $region14: #{conv3x3_relu_pallas.1} parent=0 // pred_check
    _
  $region15: #{conv3x3_relu_pallas.1} parent=0 // pred_check_branch
    %373 = sbr.rel (0) target = $region17
  $region16: #{conv3x3_relu_pallas.1} parent=0 // pred_region
    _
  $region17: #{conv3x3_relu_pallas.1} parent=0 // pred_fallthru
    _

</llo_original>
